<compile_context>
chip_gen: v6e
topology: v6e:2x2x1
jax: 0.10.0
libtpu: 0.0.40
codegen_flags: <defaults>
</compile_context>

<pallas_src>
import jax
import jax.numpy as jnp
from jax import lax
from jax.experimental import pallas as pl
from jax.experimental.pallas import tpu as pltpu

_LN_EPS = 1e-5  # PyTorch nn.LayerNorm default


def _round_up(x: int, m: int) -> int:
    return ((x + m - 1) // m) * m


def _cdiv(a: int, b: int) -> int:
    return -(-a // b)


def _lane_pack_target() -> int:
    """256 output lanes fill the 2x256^2 MXU on v6e/v7x; v5e and older want 128."""
    try:
        kind = jax.devices()[0].device_kind.lower()
    except Exception:
        return 128
    if any(tag in kind for tag in ("v6", "v7")):
        return 256
    return 128


def _vmem_capacity_bytes() -> int:
    try:
        return int(pltpu.get_tpu_info().vmem_capacity_bytes)
    except Exception:
        return 64 << 20  # v7x per-TensorCore size; conservative lower bound


def _linear_ln_kernel(x_ref, w_ref, b_ref, g_ref, beta_ref, gm_ref, o_ref):
    # x:  (tm, Kp)  compute dtype (bf16 default)
    # w:  (Kp, Np)  compute dtype, kron(I_pack, W - rowwise col-mean)  -> mean pre-folded
    # b/g/beta: (1, Np) f32 (bias already mean-centered)
    # gm: (Np, Np)  compute dtype, kron(I_pack, ones(N, N) / N)
    # o:  (tm, Np)
    #
    # x @ W' + b'  ==  y - mean(y) per N-lane group, so centering needs no extra matmul.
    yc = jnp.dot(x_ref[...], w_ref[...], preferred_element_type=jnp.float32)
    yc = yc + b_ref[...]
    # Variance via one MXU matmul against the block-diagonal averaging matrix:
    # broadcasts each group's E[(y - mean)^2] across that group's N lanes.
    sq = (yc * yc).astype(gm_ref.dtype)
    var = jnp.dot(sq, gm_ref[...], preferred_element_type=jnp.float32)
    inv = lax.rsqrt(var + _LN_EPS)
    o_ref[...] = (yc * inv * g_ref[...] + beta_ref[...]).astype(o_ref.dtype)


def _linear_layernorm_2d(x, prep, *, block_rows=1024, out_dtype=jnp.float32):
    """LayerNorm(x @ W + b) over the last axis using pre-packed params. x: (M, K)."""
    M, K = x.shape
    pack, N = prep["pack"], prep["n_out"]
    w_bd, gm = prep["w_bd"], prep["gm"]
    b_t, g_t, beta_t = prep["b"], prep["g"], prep["beta"]
    compute_dtype = w_bd.dtype
    Kp, Np = pack * K, pack * N

    # Pad only to a multiple of `pack` (usually zero rows).  The ragged last row
    # tile is handled by Pallas partial-block clipping -- no grid_m*tm jnp.pad copy.
    rows_p = _cdiv(M, pack)
    m_small = rows_p * pack
    if m_small != M:
        x = jnp.pad(x, ((0, m_small - M), (0, 0)))
    xp = x.reshape(rows_p, Kp).astype(compute_dtype)   # free row-major reshape

    sub = 16 if compute_dtype == jnp.bfloat16 else 8   # bf16 wants (16, 128) tiles
    tm = min(block_rows, _round_up(rows_p, sub))
    if rows_p > sub and _cdiv(rows_p, tm) < 2:
        # Guarantee >= 2 grid steps so both v7x TensorCores get work.
        tm = _round_up(_cdiv(rows_p, 2), sub)
    tm = max(sub, _round_up(tm, sub))
    grid_m = _cdiv(rows_p, tm)

    # Honest VMEM budget: double-buffered x/out tiles + (double-buffered) resident
    # params, ~2x slack for kernel intermediates, capped at 75% of physical VMEM.
    in_item = jnp.dtype(compute_dtype).itemsize
    out_item = jnp.dtype(out_dtype).itemsize
    tile_bytes = 2 * tm * Kp * in_item + 2 * tm * Np * out_item
    resident_bytes = 2 * (Kp * Np + Np * Np) * in_item + 2 * 3 * Np * 4
    vmem_limit = int(min(max(2 * (tile_bytes + resident_bytes), 8 << 20),
                         (3 * _vmem_capacity_bytes()) // 4))

    out = pl.pallas_call(
        _linear_ln_kernel,
        out_shape=jax.ShapeDtypeStruct((rows_p, Np), out_dtype),
        grid_spec=pltpu.PrefetchScalarGridSpec(
            num_scalar_prefetch=0,
            grid=(grid_m,),
            in_specs=[
                pl.BlockSpec((tm, Kp), lambda i: (i, 0)),
                pl.BlockSpec((Kp, Np), lambda i: (0, 0)),   # resident centered weights
                pl.BlockSpec((1, Np), lambda i: (0, 0)),
                pl.BlockSpec((1, Np), lambda i: (0, 0)),
                pl.BlockSpec((1, Np), lambda i: (0, 0)),
                pl.BlockSpec((Np, Np), lambda i: (0, 0)),   # resident averaging matrix
            ],
            out_specs=pl.BlockSpec((tm, Np), lambda i: (i, 0)),
        ),
        compiler_params=pltpu.CompilerParams(
            dimension_semantics=("parallel",),   # megacore sharding on v7x
            vmem_limit_bytes=vmem_limit,
        ),
    )(xp, w_bd, b_t, g_t, beta_t, gm)

    return out.reshape(m_small, N)[:M]


class TrunkToDecoderNetworkPallas:
    """JAX/Pallas port of foldflow TrunkToDecoderNetwork forward pass."""

    def __init__(self, single_in, pair_in, single_out, pair_out, key, *,
                 compute_dtype=jnp.bfloat16, out_dtype=None, block_rows=1024):
        k = jax.random.split(key, 2)
        self.compute_dtype = jnp.dtype(compute_dtype)
        self.out_dtype = (jnp.dtype(out_dtype) if out_dtype is not None
                          else (jnp.dtype(jnp.bfloat16)
                                if self.compute_dtype == jnp.bfloat16
                                else jnp.dtype(jnp.float32)))
        self.block_rows = block_rows
        self.single_out = single_out
        self.pair_out = pair_out
        self._lane_target = _lane_pack_target()

        def linear_init(kk, fan_in, fan_out):
            # PyTorch nn.Linear default init: U(-1/sqrt(fan_in), 1/sqrt(fan_in))
            bound = 1.0 / (fan_in ** 0.5)
            kw, kb = jax.random.split(kk)
            # weight stored transposed to (in, out) for x @ W
            w = jax.random.uniform(kw, (fan_in, fan_out), jnp.float32, -bound, bound)
            bb = jax.random.uniform(kb, (fan_out,), jnp.float32, -bound, bound)
            return w, bb

        self.w_single, self.b_single = linear_init(k[0], single_in, single_out)
        self.w_pair, self.b_pair = linear_init(k[1], pair_in, pair_out)
        # LayerNorm affine params: non-trivial deterministic values to exercise the path.
        self.g_single = 1.0 + 0.01 * jnp.arange(single_out, dtype=jnp.float32)
        self.beta_single = 0.02 * jnp.arange(single_out, dtype=jnp.float32)
        self.g_pair = 1.0 + 0.01 * jnp.arange(pair_out, dtype=jnp.float32)
        self.beta_pair = 0.02 * jnp.arange(pair_out, dtype=jnp.float32)

        self._raw = {
            "single": (self.w_single, self.b_single, self.g_single, self.beta_single),
            "pair": (self.w_pair, self.b_pair, self.g_pair, self.beta_pair),
        }
        # All kron/tile/centering prep hoisted out of the per-call path.
        self._prep = {name: self._prepare(name) for name in ("single", "pair")}

    def _prepare(self, name):
        w, b, g, beta = self._raw[name]
        N = w.shape[1]
        target = self._lane_target
        if N <= target and target % N == 0:
            pack = target // N
        else:
            pack = 1  # TODO(synk): lane-pad N for shapes not dividing 128/256 (correct but masked stores)

        # Fold LayerNorm mean into the Linear: x @ (W - colmean) + (b - mean(b)) == y - mean(y).
        w_c = w - jnp.mean(w, axis=1, keepdims=True)
        b_c = b - jnp.mean(b)

        eye = jnp.eye(pack, dtype=jnp.float32)
        w_bd = jnp.kron(eye, w_c).astype(self.compute_dtype)                  # (pack*K, pack*N)
        gm = jnp.kron(eye, jnp.full((N, N), 1.0 / N, jnp.float32)).astype(self.compute_dtype)
        return dict(
            pack=pack, n_out=N, w_bd=w_bd, gm=gm,
            b=jnp.tile(b_c, pack).reshape(1, pack * N).astype(jnp.float32),
            g=jnp.tile(g, pack).reshape(1, pack * N).astype(jnp.float32),
            beta=jnp.tile(beta, pack).reshape(1, pack * N).astype(jnp.float32),
        )

    def __call__(self, single, pair):
        # single: (B, L, single_in); pair: (B, L, L, pair_in) -- channels last
        s_shape, p_shape = single.shape, pair.shape
        s2 = single.reshape(-1, s_shape[-1])
        p2 = pair.reshape(-1, p_shape[-1])

        single_out = _linear_layernorm_2d(
            s2, self._prep["single"], block_rows=self.block_rows, out_dtype=self.out_dtype)
        pair_out = _linear_layernorm_2d(
            p2, self._prep["pair"], block_rows=self.block_rows, out_dtype=self.out_dtype)

        return (single_out.reshape(s_shape[:-1] + (self.single_out,)),
                pair_out.reshape(p_shape[:-1] + (self.pair_out,)))


def _reference(module, single, pair):
    hp = jax.lax.Precision.HIGHEST

    def ln(y, g, b):
        mean = jnp.mean(y, axis=-1, keepdims=True)
        var = jnp.mean((y - mean) ** 2, axis=-1, keepdims=True)
        return (y - mean) / jnp.sqrt(var + _LN_EPS) * g + b

    s = ln(jnp.einsum("...k,kn->...n", single, module.w_single, precision=hp) + module.b_single,
           module.g_single, module.beta_single)
    p = ln(jnp.einsum("...k,kn->...n", pair, module.w_pair, precision=hp) + module.b_pair,
           module.g_pair, module.beta_pair)
    return s, p


if __name__ == "__main__":
    key = jax.random.PRNGKey(0)
    k_param, k_single, k_pair = jax.random.split(key, 3)

    B, L = 2, 8
    single_in, pair_in = 32, 16
    single_out, pair_out = 32, 64

    single = jax.random.normal(k_single, (B, L, single_in), jnp.float32)
    pair = jax.random.normal(k_pair, (B, L, L, pair_in), jnp.float32)

    # Default (performance) path: bf16 MXU operands + bf16 output, f32 accumulation / LN math.
    mod_fast = TrunkToDecoderNetworkPallas(single_in, pair_in, single_out, pair_out, k_param)
    s_out, p_out = mod_fast(single, pair)
    jax.block_until_ready((s_out, p_out))
    assert s_out.shape == (B, L, single_out)
    assert p_out.shape == (B, L, L, pair_out)

    s_ref, p_ref = _reference(mod_fast, single, pair)
    assert jnp.allclose(s_out.astype(jnp.float32), s_ref, atol=5e-2, rtol=5e-2)
    assert jnp.allclose(p_out.astype(jnp.float32), p_ref, atol=5e-2, rtol=5e-2)

    # Strict f32 path (same deterministic weights via the same key).
    mod_f32 = TrunkToDecoderNetworkPallas(single_in, pair_in, single_out, pair_out, k_param,
                                          compute_dtype=jnp.float32, out_dtype=jnp.float32)
    s32, p32 = mod_f32(single, pair)
    jax.block_until_ready((s32, p32))
    assert jnp.allclose(s32, s_ref, atol=1e-4, rtol=1e-4)
    assert jnp.allclose(p32, p_ref, atol=1e-4, rtol=1e-4)

    print("KERNEL_OK")
</pallas_src>

<mosaic_0001>
module attributes {stable_mosaic.version = 11 : i64} {
  func.func @_linear_ln_kernel(%arg0: i32, %arg1: memref<16x128xbf16, #tpu.memory_space<vmem>>, %arg2: memref<128x128xbf16, #tpu.memory_space<vmem>>, %arg3: memref<1x128xf32, #tpu.memory_space<vmem>>, %arg4: memref<1x128xf32, #tpu.memory_space<vmem>>, %arg5: memref<1x128xf32, #tpu.memory_space<vmem>>, %arg6: memref<128x128xbf16, #tpu.memory_space<vmem>>, %arg7: memref<16x128xbf16, #tpu.memory_space<vmem>>) attributes {dimension_semantics = [#tpu.dimension_semantics<parallel>], iteration_bounds = array<i64: 1>, scalar_prefetch = 0 : i64, scratch_operands = 0 : i64, tpu.core_type = #tpu.core_type<tc>, window_params = [{transform_indices = @transform_0, window_bounds = array<i64: 16, 128>}, {pipeline_mode = #tpu.pipeline_mode<synchronous>, transform_indices = @transform_1, window_bounds = array<i64: 128, 128>}, {pipeline_mode = #tpu.pipeline_mode<synchronous>, transform_indices = @transform_2, window_bounds = array<i64: 1, 128>}, {pipeline_mode = #tpu.pipeline_mode<synchronous>, transform_indices = @transform_3, window_bounds = array<i64: 1, 128>}, {pipeline_mode = #tpu.pipeline_mode<synchronous>, transform_indices = @transform_4, window_bounds = array<i64: 1, 128>}, {pipeline_mode = #tpu.pipeline_mode<synchronous>, transform_indices = @transform_5, window_bounds = array<i64: 128, 128>}, {transform_indices = @transform_6, window_bounds = array<i64: 16, 128>}]} {
    %c0 = arith.constant 0 : index
    %c0_0 = arith.constant 0 : index
    %0 = vector.load %arg1[%c0, %c0_0] : memref<16x128xbf16, #tpu.memory_space<vmem>>, vector<16x128xbf16>
    %c0_1 = arith.constant 0 : index
    %c0_2 = arith.constant 0 : index
    %1 = vector.load %arg2[%c0_1, %c0_2] : memref<128x128xbf16, #tpu.memory_space<vmem>>, vector<128x128xbf16>
    %cst = arith.constant dense<0.000000e+00> : vector<16x128xf32>
    %2 = tpu.matmul %0, %1, %cst {dimension_numbers = #tpu.dot_dimension_numbers<[1], [0], [0], [1], [0, 0, 1, 1], [], []>} : vector<16x128xbf16>, vector<128x128xbf16>, vector<16x128xf32> -> vector<16x128xf32>
    %c0_3 = arith.constant 0 : index
    %c0_4 = arith.constant 0 : index
    %3 = vector.load %arg3[%c0_3, %c0_4] : memref<1x128xf32, #tpu.memory_space<vmem>>, vector<1x128xf32>
    %4 = vector.broadcast %3 : vector<1x128xf32> to vector<16x128xf32>
    %5 = arith.addf %2, %4 : vector<16x128xf32>
    %6 = arith.mulf %5, %5 : vector<16x128xf32>
    %7 = arith.truncf %6 : vector<16x128xf32> to vector<16x128xbf16>
    %c0_5 = arith.constant 0 : index
    %c0_6 = arith.constant 0 : index
    %8 = vector.load %arg6[%c0_5, %c0_6] : memref<128x128xbf16, #tpu.memory_space<vmem>>, vector<128x128xbf16>
    %cst_7 = arith.constant dense<0.000000e+00> : vector<16x128xf32>
    %9 = tpu.matmul %7, %8, %cst_7 {dimension_numbers = #tpu.dot_dimension_numbers<[1], [0], [0], [1], [0, 0, 1, 1], [], []>} : vector<16x128xbf16>, vector<128x128xbf16>, vector<16x128xf32> -> vector<16x128xf32>
    %cst_8 = arith.constant 9.99999974E-6 : f32
    %10 = vector.broadcast %cst_8 : f32 to vector<16x128xf32>
    %11 = arith.addf %9, %10 : vector<16x128xf32>
    %12 = math.rsqrt %11 : vector<16x128xf32>
    %13 = arith.mulf %5, %12 : vector<16x128xf32>
    %c0_9 = arith.constant 0 : index
    %c0_10 = arith.constant 0 : index
    %14 = vector.load %arg4[%c0_9, %c0_10] : memref<1x128xf32, #tpu.memory_space<vmem>>, vector<1x128xf32>
    %15 = vector.broadcast %14 : vector<1x128xf32> to vector<16x128xf32>
    %16 = arith.mulf %13, %15 : vector<16x128xf32>
    %c0_11 = arith.constant 0 : index
    %c0_12 = arith.constant 0 : index
    %17 = vector.load %arg5[%c0_11, %c0_12] : memref<1x128xf32, #tpu.memory_space<vmem>>, vector<1x128xf32>
    %18 = vector.broadcast %17 : vector<1x128xf32> to vector<16x128xf32>
    %19 = arith.addf %16, %18 : vector<16x128xf32>
    %20 = arith.truncf %19 : vector<16x128xf32> to vector<16x128xbf16>
    %c0_13 = arith.constant 0 : index
    %c0_14 = arith.constant 0 : index
    %21 = vector.load %arg7[%c0_13, %c0_14] : memref<16x128xbf16, #tpu.memory_space<vmem>>, vector<16x128xbf16>
    tpu.vector_store %arg7[%c0_13, %c0_14], %20 {strides = array<i32>} : memref<16x128xbf16, #tpu.memory_space<vmem>>, vector<16x128xbf16>,
    return
  }
  func.func @transform_0(%arg0: i32) -> (i32, i32) {
    %c0_i32 = arith.constant 0 : i32
    %c0_i32_0 = arith.constant 0 : i32
    return %arg0, %c0_i32 : i32, i32
  }
  func.func @transform_1(%arg0: i32) -> (i32, i32) {
    %c0_i32 = arith.constant 0 : i32
    %c0_i32_0 = arith.constant 0 : i32
    %c0_i32_1 = arith.constant 0 : i32
    return %c0_i32, %c0_i32_0 : i32, i32
  }
  func.func @transform_2(%arg0: i32) -> (i32, i32) {
    %c0_i32 = arith.constant 0 : i32
    %c0_i32_0 = arith.constant 0 : i32
    %c0_i32_1 = arith.constant 0 : i32
    return %c0_i32, %c0_i32_0 : i32, i32
  }
  func.func @transform_3(%arg0: i32) -> (i32, i32) {
    %c0_i32 = arith.constant 0 : i32
    %c0_i32_0 = arith.constant 0 : i32
    %c0_i32_1 = arith.constant 0 : i32
    return %c0_i32, %c0_i32_0 : i32, i32
  }
  func.func @transform_4(%arg0: i32) -> (i32, i32) {
    %c0_i32 = arith.constant 0 : i32
    %c0_i32_0 = arith.constant 0 : i32
    %c0_i32_1 = arith.constant 0 : i32
    return %c0_i32, %c0_i32_0 : i32, i32
  }
  func.func @transform_5(%arg0: i32) -> (i32, i32) {
    %c0_i32 = arith.constant 0 : i32
    %c0_i32_0 = arith.constant 0 : i32
    %c0_i32_1 = arith.constant 0 : i32
    return %c0_i32, %c0_i32_0 : i32, i32
  }
  func.func @transform_6(%arg0: i32) -> (i32, i32) {
    %c0_i32 = arith.constant 0 : i32
    %c0_i32_0 = arith.constant 0 : i32
    return %arg0, %c0_i32 : i32, i32
  }
}

</mosaic_0001>

<llo_original>
// kernel: tpu_custom_call.1
$region0: #{tpu_custom_call.1}
  #allocation0 [shape = 'u32[]', space=smem, size = 0x4, offset = 0x4, fixed_abs, tag = 'smem constant byte address 0x4 - core index']
  #allocation1 [shape = 'u32[144,128]{1,0:T(1,128)}', space=vmem, size = 0x12000, scoped, tag = 'internal scratch']
  %s0 = inlined_call_operand.hbm [shape: bf16[4,128], index: 0, kind: input, shape index: {}]
  %s1 = inlined_call_operand.hbm [shape: bf16[128,128], index: 1, kind: input, shape index: {}]
  %s2 = inlined_call_operand.vmem [shape: f32[1,128], index: 2, kind: input, shape index: {}]
  %s3 = inlined_call_operand.vmem [shape: f32[1,128], index: 3, kind: input, shape index: {}]
  %s4 = inlined_call_operand.vmem [shape: f32[1,128], index: 4, kind: input, shape index: {}]
  %s5 = inlined_call_operand.hbm [shape: bf16[128,128], index: 5, kind: input, shape index: {}]
  %s6 = inlined_call_operand.hbm [shape: bf16[4,128], index: 6, kind: output, shape index: {}]
  %s7 = sld [smem:[#allocation0]]
  $region46: #{tpu_custom_call.1} parent=0
    _
  %s9 = ssub.s32 1, %s7
  %s10 = scalar_select 0, %s9, %s7
  $region1: #{tpu_custom_call.1} parent=0
    #allocation2 [shape = 'u8[4096]{0}', space=vmem, size = 0x1000, scoped, tag = 'input window, operand 0, single buffered']
    #allocation3 [shape = 's32[1]{0}', space=sflag, size = 0x4, scoped, tag = 'scoped memory for tpu_custom_call.1']
    #allocation4 [shape = 's32[1]{0}', space=sflag, size = 0x4, scoped, tag = 'scoped memory for tpu_custom_call.1']
    #allocation5 [shape = 'u8[32768]{0}', space=vmem, size = 0x8000, scoped, tag = 'input window, operand 1, single buffered']
    #allocation6 [shape = 's32[1]{0}', space=sflag, size = 0x4, scoped, tag = 'scoped memory for tpu_custom_call.1']
    #allocation7 [shape = 'u8[32768]{0}', space=vmem, size = 0x8000, scoped, tag = 'input window, operand 5, single buffered']
    #allocation8 [shape = 'u8[4096]{0}', space=vmem, size = 0x1000, scoped, tag = 'output window, operand 0, single buffered']
    %11 = vsyncpa [#allocation3], 0
    %12 = vsyncpa [#allocation6], 0
    %13 = vsyncpa [#allocation4], 0
    // Predicated region
    $region2: #{tpu_custom_call.1} parent=1 // pred_check
      _
    $region3: #{tpu_custom_call.1} parent=1 // pred_check_branch
      %15 = sbr.rel (0) target = $region5
    $region4: #{tpu_custom_call.1} parent=1 // pred_region
      %s17 = ssub.s32 128, 32
      %18 = vsyncadd [#allocation3], %s17
      %s19 = sshll.u32 [#allocation2], 4
      %s20 = int_to_ptr.vmem [resolvable:$true] %s19
      %25 = dma.hbm_to_vmem [thread:$0]  %s0, 32, %s20, [#allocation3], 32, 32, 2
    $region5: #{tpu_custom_call.1} parent=1 // pred_fallthru
      _
    // Predicated region
    $region6: #{tpu_custom_call.1} parent=1 // pred_check
      _
    $region7: #{tpu_custom_call.1} parent=1 // pred_check_branch
      %27 = sbr.rel (0) target = $region9
    $region8: #{tpu_custom_call.1} parent=1 // pred_region
      %s29 = ssub.s32 1024, 1024
      %30 = vsyncadd [#allocation6], %s29
      %s31 = sshll.u32 [#allocation5], 4
      %s32 = int_to_ptr.vmem [resolvable:$true] %s31
      %37 = dma.hbm_to_vmem [thread:$0]  %s1, 1024, %s32, [#allocation6], 64, 64, 4
    $region9: #{tpu_custom_call.1} parent=1 // pred_fallthru
      _
    // Predicated region
    $region10: #{tpu_custom_call.1} parent=1 // pred_check
      _
    $region11: #{tpu_custom_call.1} parent=1 // pred_check_branch
      %39 = sbr.rel (0) target = $region13
    $region12: #{tpu_custom_call.1} parent=1 // pred_region
      _
    $region13: #{tpu_custom_call.1} parent=1 // pred_fallthru
      _
    // Predicated region
    $region14: #{tpu_custom_call.1} parent=1 // pred_check
      _
    $region15: #{tpu_custom_call.1} parent=1 // pred_check_branch
      %41 = sbr.rel (0) target = $region17
    $region16: #{tpu_custom_call.1} parent=1 // pred_region
      _
    $region17: #{tpu_custom_call.1} parent=1 // pred_fallthru
      _
    // Predicated region
    $region18: #{tpu_custom_call.1} parent=1 // pred_check
      _
    $region19: #{tpu_custom_call.1} parent=1 // pred_check_branch
      %43 = sbr.rel (0) target = $region21
    $region20: #{tpu_custom_call.1} parent=1 // pred_region
      _
    $region21: #{tpu_custom_call.1} parent=1 // pred_fallthru
      _
    // Predicated region
    $region22: #{tpu_custom_call.1} parent=1 // pred_check
      _
    $region23: #{tpu_custom_call.1} parent=1 // pred_check_branch
      %45 = sbr.rel (0) target = $region25
    $region24: #{tpu_custom_call.1} parent=1 // pred_region
      %s47 = ssub.s32 1024, 1024
      %48 = vsyncadd [#allocation6], %s47
      %s49 = sshll.u32 [#allocation7], 4
      %s50 = int_to_ptr.vmem [resolvable:$true] %s49
      %55 = dma.hbm_to_vmem [thread:$0]  %s5, 1024, %s50, [#allocation6], 64, 64, 4
    $region25: #{tpu_custom_call.1} parent=1 // pred_fallthru
      _
    // Predicated region
    $region26: #{tpu_custom_call.1} parent=1 // pred_check
      _
    $region27: #{tpu_custom_call.1} parent=1 // pred_check_branch
      %57 = sbr.rel (0) target = $region29
    $region28: #{tpu_custom_call.1} parent=1 // pred_region
      %58 = dma.done [#allocation3], 128
    $region29: #{tpu_custom_call.1} parent=1 // pred_fallthru
      _
    // Predicated region
    $region30: #{tpu_custom_call.1} parent=1 // pred_check
      _
    $region31: #{tpu_custom_call.1} parent=1 // pred_check_branch
      %60 = sbr.rel (0) target = $region33
    $region32: #{tpu_custom_call.1} parent=1 // pred_region
      %61 = dma.done [#allocation6], 1024
    $region33: #{tpu_custom_call.1} parent=1 // pred_fallthru
      _
    // Predicated region
    $region34: #{tpu_custom_call.1} parent=1 // pred_check
      _
    $region35: #{tpu_custom_call.1} parent=1 // pred_check_branch
      %63 = sbr.rel (0) target = $region37
    $region36: #{tpu_custom_call.1} parent=1 // pred_region
      %64 = dma.done [#allocation6], 1024
    $region37: #{tpu_custom_call.1} parent=1 // pred_fallthru
      _
    %v66 = vld [vmem:[#allocation2] sm:$0x3]
    %v67 = vld [vmem:[#allocation2 + $0x2] sm:$0x3]
    %v68 = vld [vmem:[#allocation2 + $0x4] sm:$0x3]
    %v69 = vld [vmem:[#allocation2 + $0x6] sm:$0x3]
    %v70 = vld [vmem:[#allocation5] sm:$0xf]
    %v71 = vld [vmem:[#allocation5 + $0x4] sm:$0xf]
    %v72 = vld [vmem:[#allocation5 + $0x8] sm:$0xf]
    %v73 = vld [vmem:[#allocation5 + $0xc] sm:$0xf]
    %v74 = vld [vmem:[#allocation5 + $0x10] sm:$0xf]
    %v75 = vld [vmem:[#allocation5 + $0x14] sm:$0xf]
    %v76 = vld [vmem:[#allocation5 + $0x18] sm:$0xf]
    %v77 = vld [vmem:[#allocation5 + $0x1c] sm:$0xf]
    %v78 = vld [vmem:[#allocation5 + $0x20] sm:$0xf]
    %v79 = vld [vmem:[#allocation5 + $0x24] sm:$0xf]
    %v80 = vld [vmem:[#allocation5 + $0x28] sm:$0xf]
    %v81 = vld [vmem:[#allocation5 + $0x2c] sm:$0xf]
    %v82 = vld [vmem:[#allocation5 + $0x30] sm:$0xf]
    %v83 = vld [vmem:[#allocation5 + $0x34] sm:$0xf]
    %v84 = vld [vmem:[#allocation5 + $0x38] sm:$0xf]
    %v85 = vld [vmem:[#allocation5 + $0x3c] sm:$0xf]
    %v86 = vld [vmem:[%s2] sm:$0x1]
    %v88 = vlaneseq
    %v89 = vshrl.u32 %v88, 7
    %v90 = vsub.s32 0, %v89
    %v91 = vrot.slane %v86, %v90
    %v97 = vcombine.low %v66, %v67
    %v98 = vcombine.low %v68, %v69
    %v100 = vunpack.c.l.s4 1983009808
    %v101 = vunpack.c.0.s8 %v100
    %v102 = vlaneseq
    %v103 = vshrl.u32 %v102, 7
    %v104 = vsub.s32 %v101, %v103
    %v105 = vrot.slane %v97, %v104
    %v107 = vunpack.c.l.s4 1983009808
    %v108 = vunpack.c.0.s8 %v107
    %v109 = vlaneseq
    %v110 = vshrl.u32 %v109, 7
    %v111 = vsub.s32 %v108, %v110
    %v112 = vrot.slane %v98, %v111
    %v113 = vcombine.low %v105, %v112
    %v131 = vunpack.c.l.b16 %v70
    %v132 = vunpack.c.l.b16 %v71
    %v133 = vunpack.c.l.b16 %v72
    %v134 = vunpack.c.l.b16 %v73
    %v135 = vunpack.c.l.b16 %v74
    %v136 = vunpack.c.l.b16 %v75
    %v137 = vunpack.c.l.b16 %v76
    %v138 = vunpack.c.l.b16 %v77
    %v139 = vunpack.c.l.b16 %v78
    %v140 = vunpack.c.l.b16 %v79
    %v141 = vunpack.c.l.b16 %v80
    %v142 = vunpack.c.l.b16 %v81
    %v143 = vunpack.c.l.b16 %v82
    %v144 = vunpack.c.l.b16 %v83
    %v145 = vunpack.c.l.b16 %v84
    %v146 = vunpack.c.l.b16 %v85
    %v147 = vpack.c.b16 %v132, %v131
    %v148 = vpack.c.b16 %v134, %v133
    %v149 = vpack.c.b16 %v136, %v135
    %v150 = vpack.c.b16 %v138, %v137
    %v151 = vpack.c.b16 %v140, %v139
    %v152 = vpack.c.b16 %v142, %v141
    %v153 = vpack.c.b16 %v144, %v143
    %v154 = vpack.c.b16 %v146, %v145
    %163 = vmatprep.subr.bf16.mxu0 0
    %164 = vmatpush1.bf16.msra.mxu0 %v154
    %165 = vmatprep.subr.bf16.mxu0 0
    %166 = vmatpush1.bf16.msra.mxu0 %v153
    %167 = vmatprep.subr.bf16.mxu0 0
    %168 = vmatpush1.bf16.msra.mxu0 %v152
    %169 = vmatprep.subr.bf16.mxu0 0
    %170 = vmatpush1.bf16.msra.mxu0 %v151
    %171 = vmatprep.subr.bf16.mxu0 0
    %172 = vmatpush1.bf16.msra.mxu0 %v150
    %173 = vmatprep.subr.bf16.mxu0 0
    %174 = vmatpush1.bf16.msra.mxu0 %v149
    %175 = vmatprep.subr.bf16.mxu0 0
    %176 = vmatpush1.bf16.msra.mxu0 %v148
    %177 = vmatprep.subr.bf16.mxu0 0
    %178 = vmatpush1.bf16.msra.mxu0 %v147
    %179 = vmatprep.subr.bf16.mxu0 0
    %180 = vmatpush2.bf16.msra.mxu0 0
    %181 = vmatprep.subr.bf16.mxu0 0
    %182 = vmatpush2.bf16.msra.mxu0 0
    %183 = vmatprep.subr.bf16.mxu0 0
    %184 = vmatpush2.bf16.msra.mxu0 0
    %185 = vmatprep.subr.bf16.mxu0 0
    %186 = vmatpush2.bf16.msra.mxu0 0
    %187 = vmatprep.subr.bf16.mxu0 0
    %188 = vmatpush2.bf16.msra.mxu0 0
    %189 = vmatprep.subr.bf16.mxu0 0
    %190 = vmatpush2.bf16.msra.mxu0 0
    %191 = vmatprep.subr.bf16.mxu0 0
    %192 = vmatpush2.bf16.msra.mxu0 0
    %193 = vmatprep.subr.bf16.mxu0 0
    %194 = vmatpush2.bf16.msra.mxu0 0
    %195 = vmatprep.mubr.bf16.mxu0 0
    %196 = vmatmul.mubr.bf16.gmra.mxu0 %v113
    %v197 = vpop.f32.mrf.mxu0
    %v198 = vadd.f32 %v91, %v197
    %v199 = vpop.f32.mrf.mxu0
    %v200 = vpop.f32.mrf.mxu0
    %v201 = vadd.f32 %v91, %v200
    %v202 = vpop.f32.mrf.mxu0
    %203 = vdwg.mxu0
    %v204 = vmul.f32 %v198, %v198
    %v205 = vmul.f32 %v201, %v201
    %v206 = vpack.c.bf16 %v205, %v204
    %v207 = vld [vmem:[#allocation7] sm:$0xf]
    %v208 = vld [vmem:[#allocation7 + $0x4] sm:$0xf]
    %v209 = vld [vmem:[#allocation7 + $0x8] sm:$0xf]
    %v210 = vld [vmem:[#allocation7 + $0xc] sm:$0xf]
    %v211 = vld [vmem:[#allocation7 + $0x10] sm:$0xf]
    %v212 = vld [vmem:[#allocation7 + $0x14] sm:$0xf]
    %v213 = vld [vmem:[#allocation7 + $0x18] sm:$0xf]
    %v214 = vld [vmem:[#allocation7 + $0x1c] sm:$0xf]
    %v215 = vld [vmem:[#allocation7 + $0x20] sm:$0xf]
    %v216 = vld [vmem:[#allocation7 + $0x24] sm:$0xf]
    %v217 = vld [vmem:[#allocation7 + $0x28] sm:$0xf]
    %v218 = vld [vmem:[#allocation7 + $0x2c] sm:$0xf]
    %v219 = vld [vmem:[#allocation7 + $0x30] sm:$0xf]
    %v220 = vld [vmem:[#allocation7 + $0x34] sm:$0xf]
    %v221 = vld [vmem:[#allocation7 + $0x38] sm:$0xf]
    %v222 = vld [vmem:[#allocation7 + $0x3c] sm:$0xf]
    %v239 = vunpack.c.l.b16 %v207
    %v240 = vunpack.c.l.b16 %v208
    %v241 = vunpack.c.l.b16 %v209
    %v242 = vunpack.c.l.b16 %v210
    %v243 = vunpack.c.l.b16 %v211
    %v244 = vunpack.c.l.b16 %v212
    %v245 = vunpack.c.l.b16 %v213
    %v246 = vunpack.c.l.b16 %v214
    %v247 = vunpack.c.l.b16 %v215
    %v248 = vunpack.c.l.b16 %v216
    %v249 = vunpack.c.l.b16 %v217
    %v250 = vunpack.c.l.b16 %v218
    %v251 = vunpack.c.l.b16 %v219
    %v252 = vunpack.c.l.b16 %v220
    %v253 = vunpack.c.l.b16 %v221
    %v254 = vunpack.c.l.b16 %v222
    %v255 = vpack.c.b16 %v240, %v239
    %v256 = vpack.c.b16 %v242, %v241
    %v257 = vpack.c.b16 %v244, %v243
    %v258 = vpack.c.b16 %v246, %v245
    %v259 = vpack.c.b16 %v248, %v247
    %v260 = vpack.c.b16 %v250, %v249
    %v261 = vpack.c.b16 %v252, %v251
    %v262 = vpack.c.b16 %v254, %v253
    %271 = vmatprep.subr.bf16.mxu0 0
    %272 = vmatpush1.bf16.msra.mxu0 %v262
    %273 = vmatprep.subr.bf16.mxu0 0
    %274 = vmatpush1.bf16.msra.mxu0 %v261
    %275 = vmatprep.subr.bf16.mxu0 0
    %276 = vmatpush1.bf16.msra.mxu0 %v260
    %277 = vmatprep.subr.bf16.mxu0 0
    %278 = vmatpush1.bf16.msra.mxu0 %v259
    %279 = vmatprep.subr.bf16.mxu0 0
    %280 = vmatpush1.bf16.msra.mxu0 %v258
    %281 = vmatprep.subr.bf16.mxu0 0
    %282 = vmatpush1.bf16.msra.mxu0 %v257
    %283 = vmatprep.subr.bf16.mxu0 0
    %284 = vmatpush1.bf16.msra.mxu0 %v256
    %285 = vmatprep.subr.bf16.mxu0 0
    %286 = vmatpush1.bf16.msra.mxu0 %v255
    %287 = vmatprep.subr.bf16.mxu0 0
    %288 = vmatpush2.bf16.msra.mxu0 0
    %289 = vmatprep.subr.bf16.mxu0 0
    %290 = vmatpush2.bf16.msra.mxu0 0
    %291 = vmatprep.subr.bf16.mxu0 0
    %292 = vmatpush2.bf16.msra.mxu0 0
    %293 = vmatprep.subr.bf16.mxu0 0
    %294 = vmatpush2.bf16.msra.mxu0 0
    %295 = vmatprep.subr.bf16.mxu0 0
    %296 = vmatpush2.bf16.msra.mxu0 0
    %297 = vmatprep.subr.bf16.mxu0 0
    %298 = vmatpush2.bf16.msra.mxu0 0
    %299 = vmatprep.subr.bf16.mxu0 0
    %300 = vmatpush2.bf16.msra.mxu0 0
    %301 = vmatprep.subr.bf16.mxu0 0
    %302 = vmatpush2.bf16.msra.mxu0 0
    %303 = vmatprep.mubr.bf16.mxu0 0
    %304 = vmatmul.mubr.bf16.gmra.mxu0 %v206
    %v305 = vpop.f32.mrf.mxu0
    %v306 = vadd.f32 1e-05, %v305
    %v307 = vpop.f32.mrf.mxu0
    %v308 = vpop.f32.mrf.mxu0
    %v309 = vadd.f32 1e-05, %v308
    %v310 = vpop.f32.mrf.mxu0
    %311 = vdwg.mxu0
    %v312 = vrsqrt.pop %v306
    %v313 = vrsqrt.pop %v309
    %v314 = vmul.f32 %v198, %v312
    %v315 = vmul.f32 %v201, %v313
    %v316 = vld [vmem:[%s3] sm:$0x1]
    %v318 = vlaneseq
    %v319 = vshrl.u32 %v318, 7
    %v320 = vsub.s32 0, %v319
    %v321 = vrot.slane %v316, %v320
    %v323 = vmul.f32 %v314, %v321
    %v324 = vmul.f32 %v315, %v321
    %v325 = vld [vmem:[%s4] sm:$0x1]
    %v327 = vlaneseq
    %v328 = vshrl.u32 %v327, 7
    %v329 = vsub.s32 0, %v328
    %v330 = vrot.slane %v325, %v329
    %v332 = vadd.f32 %v323, %v330
    %v333 = vadd.f32 %v324, %v330
    %v334 = vpack.c.bf16 %v333, %v332
    %v336 = vcombine.high %v334, %v334
    %v338 = vunpack.c.l.s4 1983009808
    %v339 = vunpack.c.0.s8 %v338
    %v340 = vlaneseq
    %v341 = vshrl.u32 %v340, 7
    %v342 = vsub.s32 %v339, %v341
    %v343 = vrot.slane %v334, %v342
    %v345 = vunpack.c.l.s4 1983009808
    %v346 = vunpack.c.0.s8 %v345
    %v347 = vlaneseq
    %v348 = vshrl.u32 %v347, 7
    %v349 = vsub.s32 %v346, %v348
    %v350 = vrot.slane %v336, %v349
    %v351 = vcombine.high %v343, %v343
    %v352 = vcombine.high %v350, %v350
    %357 = vst [vmem:[#allocation8] sm:$0x3] %v343
    %358 = vst [vmem:[#allocation8 + $0x2] sm:$0x3] %v351
    %359 = vst [vmem:[#allocation8 + $0x4] sm:$0x3] %v350
    %360 = vst [vmem:[#allocation8 + $0x6] sm:$0x3] %v352
    // Predicated region
    $region38: #{tpu_custom_call.1} parent=1 // pred_check
      _
    $region39: #{tpu_custom_call.1} parent=1 // pred_check_branch
      %362 = sbr.rel (0) target = $region41
    $region40: #{tpu_custom_call.1} parent=1 // pred_region
      %s364 = ssub.s32 128, 32
      %365 = vsyncadd [#allocation4], %s364
      %s366 = sshll.u32 [#allocation8], 4
      %s367 = int_to_ptr.vmem [resolvable:$true] %s366
      %372 = dma.vmem_to_hbm [thread:$0]  %s367, 32, %s6, [#allocation4], 32, 32, 2
    $region41: #{tpu_custom_call.1} parent=1 // pred_fallthru
      _
    // Predicated region
    $region42: #{tpu_custom_call.1} parent=1 // pred_check
      _
    $region43: #{tpu_custom_call.1} parent=1 // pred_check_branch
      %374 = sbr.rel (0) target = $region45
    $region44: #{tpu_custom_call.1} parent=1 // pred_region
      %375 = dma.done [#allocation4], 128
    $region45: #{tpu_custom_call.1} parent=1 // pred_fallthru
      _
    %376 = vsyncpa [#allocation3], 1
    %377 = vsyncpa [#allocation6], 1
    %378 = vsyncpa [#allocation4], 1

</llo_original>
